<compile_context>
chip_gen: v7x
topology: tpu7x:2x2x1
jax: 0.10.0
libtpu: 0.0.40
codegen_flags: <defaults>
</compile_context>

<pallas_src>
import functools

import numpy as np
import jax
import jax.numpy as jnp
from jax.experimental import pallas as pl
from jax.experimental.pallas import tpu as pltpu

EPS = float(np.finfo(np.float32).eps)
LOG_HALF = float(np.log(0.5))


def _mean_field_kernel(Jt_hbm, b_ref, diagJ_ref, out_ref, jt_vmem, copy_sems, *,
                       max_iter, panel_rows):
    """All mean-field iterations run inside the kernel.

    Jt_hbm    : (Np, Np) HBM ref, transpose of (zero-padded) J, matmul dtype
    b_ref     : (1, Np) f32 VMEM, unary params as a row vector (padded)
    diagJ_ref : (1, Np) f32 VMEM, diag(J) + EPS as a row vector (padded)
    out_ref   : (2, Np) f32 VMEM, row 0 = log_prob[:, 0], row 1 = log_prob[:, 1]
    jt_vmem   : (Np, Np) VMEM scratch that J^T is streamed into
    copy_sems : (n_panels,) DMA semaphores
    """
    n_pad = jt_vmem.shape[0]
    n_panels = n_pad // panel_rows
    mm_dtype = jt_vmem.dtype

    if max_iter == 0:
        init = jnp.full((1, n_pad), LOG_HALF, dtype=jnp.float32)
        out_ref[0:1, :] = init
        out_ref[1:2, :] = init
        return

    # Kick off the HBM -> VMEM transfer of J^T in row panels so iteration 1's matvec
    # can start on panel 0 while the remaining panels are still in flight.
    copies = []
    for p in range(n_panels):
        sl = pl.ds(p * panel_rows, panel_rows)
        cp = pltpu.make_async_copy(Jt_hbm.at[sl], jt_vmem.at[sl], copy_sems.at[p])
        cp.start()
        copies.append(cp)

    # Loop-invariant terms hoisted out of the iteration loop.
    two_b_m1 = 2.0 * b_ref[...] - 1.0   # (1, Np) f32
    diag_j = diagJ_ref[...]             # (1, Np) f32, already includes +EPS

    def matvec_streamed(x):
        # Iteration 1: accumulate J @ x panel-by-panel as the DMAs complete.
        xq = x.astype(mm_dtype)
        acc = jnp.zeros((1, n_pad), dtype=jnp.float32)
        for p, cp in enumerate(copies):
            cp.wait()
            panel = jt_vmem[pl.ds(p * panel_rows, panel_rows), :]
            acc = acc + jnp.dot(xq[:, p * panel_rows:(p + 1) * panel_rows], panel,
                                preferred_element_type=jnp.float32)
        return acc

    def matvec_resident(x):
        # Iterations 2..max_iter: J^T is fully resident in VMEM.
        return jnp.dot(x.astype(mm_dtype), jt_vmem[...],
                       preferred_element_type=jnp.float32)

    def iterate(lp1, matvec_fn):
        # After normalization exp(lp0) + exp(lp1) == 1, so:
        #   prob[:,0] - 1 == -exp(lp1)   and   1 - prob[:,0] == exp(lp1)
        e1 = jnp.exp(lp1)                                   # (1, Np)
        x = -e1                                             # tmp_prob - 1
        matvec = matvec_fn(x)                               # J @ (tmp_prob - 1)
        tmp = (jnp.log(e1 + EPS)                            # log(1 - p0 + EPS)
               + 8.0 * matvec
               + 4.0 * diag_j * e1                          # == -4*diag_j*(p0-1)
               + two_b_m1)
        # 2-way logsumexp: max + log1p(exp(-|diff|))  (single exp per node)
        m = jnp.maximum(tmp, lp1)
        lse = m + jnp.log1p(jnp.exp(-jnp.abs(tmp - lp1)))
        return tmp - lse, lp1 - lse

    lp1 = jnp.full((1, n_pad), LOG_HALF, dtype=jnp.float32)
    lp0 = lp1

    # Fully unrolled serial iterations (max_iter is a small compile-time constant).
    lp0, lp1 = iterate(lp1, matvec_streamed)
    for _ in range(max_iter - 1):
        lp0, lp1 = iterate(lp1, matvec_resident)

    out_ref[0:1, :] = lp0
    out_ref[1:2, :] = lp1


def mean_field_forward(A, J, b, msg_node, msg_adj, target=None, mask=None, *,
                       max_iter=5, damping=0.9, matmul_dtype=jnp.float32):
    """Matches MeanField.forward. A / msg_node / msg_adj / damping / mask are accepted
    for signature parity but (as in the PyTorch forward) do not affect log_prob."""
    del A, msg_node, msg_adj, mask, damping  # unused by the reference forward pass
    J = jnp.asarray(J, jnp.float32)
    b = jnp.asarray(b, jnp.float32)
    n = J.shape[0]

    # Pad node dimension to a multiple of 128 lanes (also a multiple of 8 sublanes for
    # the J^T rows) so all vregs / MXU tiles / stores are full and unmasked.
    n_pad = max(128, ((n + 127) // 128) * 128)
    pad = n_pad - n

    Jt = jnp.pad(J.T, ((0, pad), (0, pad))).astype(matmul_dtype)          # (Np, Np)
    b_row = jnp.pad(b.reshape(1, n), ((0, 0), (0, pad)))                  # (1, Np)
    diag_row = jnp.pad(jnp.diagonal(J).reshape(1, n), ((0, 0), (0, pad))) + EPS

    # Panel size for streaming J^T: a multiple of 128 rows that divides Np.
    panel_rows = 256 if (n_pad % 256 == 0) else 128
    n_panels = n_pad // panel_rows

    # Generation-aware VMEM sizing: single-buffered resident J^T + headroom, clamped to
    # the physical capacity of this chip (64 MiB on v7x, 128 MiB on v5e/v6e).
    jt_bytes = n_pad * n_pad * jnp.dtype(matmul_dtype).itemsize
    try:
        vmem_cap = int(pltpu.get_tpu_info().vmem_capacity_bytes)
    except Exception:  # pragma: no cover - conservative fallback
        vmem_cap = 64 * 1024 * 1024
    vmem_limit = int(min(vmem_cap - (4 << 20), max(32 << 20, jt_bytes + (8 << 20))))

    kernel = functools.partial(_mean_field_kernel, max_iter=max_iter,
                               panel_rows=panel_rows)

    out = pl.pallas_call(
        kernel,
        out_shape=jax.ShapeDtypeStruct((2, n_pad), jnp.float32),
        in_specs=[
            pl.BlockSpec(memory_space=pl.ANY),            # J^T stays in HBM, streamed
            pl.BlockSpec((1, n_pad), lambda: (0, 0)),
            pl.BlockSpec((1, n_pad), lambda: (0, 0)),
        ],
        out_specs=pl.BlockSpec((2, n_pad), lambda: (0, 0)),
        scratch_shapes=[
            pltpu.VMEM((n_pad, n_pad), matmul_dtype),
            pltpu.SemaphoreType.DMA((n_panels,)),
        ],
        compiler_params=pltpu.CompilerParams(vmem_limit_bytes=vmem_limit),
    )(Jt, b_row, diag_row)

    log_prob = out[:, :n].T  # (N, 2) — PyTorch convention

    loss = None
    if target is not None:
        t = jnp.asarray(target, jnp.float32)
        # KLDivLoss(reduction='sum'): sum(target * (log(target) - log_prob)), 0 where target==0
        loss = jnp.sum(jnp.where(t > 0,
                                 t * (jnp.log(jnp.where(t > 0, t, 1.0)) - log_prob),
                                 0.0))
    return log_prob, loss


def _mean_field_ref_np(J, b, max_iter):
    """Pure-numpy transcription of the PyTorch forward, for verification."""
    n = J.shape[0]
    log_prob = np.log(np.ones((n, 2), np.float64) / 2.0)
    J = J.astype(np.float64)
    b = b.astype(np.float64)
    for _ in range(max_iter):
        prob = np.exp(log_prob)
        diag_j = np.diag(J).reshape(-1, 1) + EPS
        tp = prob[:, 0:1]
        tmp = (np.log(1.0 - tp + EPS) + 8.0 * J.dot(tp - 1.0)
               - 4.0 * diag_j * (tp - 1.0) + 2.0 * b - 1.0)
        log_prob = np.concatenate([tmp, log_prob[:, 1:2]], axis=1)
        m = log_prob.max(axis=1, keepdims=True)
        lse = m + np.log(np.exp(log_prob - m).sum(axis=1, keepdims=True))
        log_prob = log_prob - lse
    return log_prob


if __name__ == "__main__":
    N = 16          # number of graph nodes
    MAX_ITER = 5    # config.model.max_iter
    DAMPING = 0.9   # config.model.damping (unused by forward, kept for parity)

    key = jax.random.PRNGKey(0)
    kJ, kb, kA = jax.random.split(key, 3)

    R = jax.random.normal(kJ, (N, N), jnp.float32) * 0.1
    J = 0.5 * (R + R.T)                                   # symmetric pairwise params
    b = jax.random.normal(kb, (N, 1), jnp.float32) * 0.1  # unary params
    A = (jax.random.uniform(kA, (N, N)) > 0.5).astype(jnp.float32)
    A = jnp.triu(A, 1)
    A = A + A.T                                           # binary symmetric adjacency

    # message-graph args (unused by forward, included for signature parity)
    E = 2 * int(jnp.sum(jnp.triu(A, 1)))
    msg_node = jnp.zeros((max(E, 1), 2), jnp.int32)
    msg_adj = jnp.zeros((max(E, 1), max(E, 1)), jnp.float32)

    ref = _mean_field_ref_np(np.asarray(J), np.asarray(b), MAX_ITER)

    # Exact (f32 MXU) path — strict check against the f64 reference.
    log_prob, loss = mean_field_forward(A, J, b, msg_node, msg_adj,
                                        max_iter=MAX_ITER, damping=DAMPING)
    log_prob = jax.block_until_ready(log_prob)
    np.testing.assert_allclose(np.asarray(log_prob), ref, atol=1e-4, rtol=1e-4)

    # bf16-J^T MXU path (halves J^T DMA / VMEM / vld traffic) — loose check.
    log_prob_bf16, _ = mean_field_forward(A, J, b, msg_node, msg_adj,
                                          max_iter=MAX_ITER, damping=DAMPING,
                                          matmul_dtype=jnp.bfloat16)
    log_prob_bf16 = jax.block_until_ready(log_prob_bf16)
    np.testing.assert_allclose(np.asarray(log_prob_bf16), ref, atol=1e-1, rtol=1e-1)

    print("KERNEL_OK")
</pallas_src>

<mosaic_0001>
module attributes {stable_mosaic.version = 11 : i64} {
  func.func @_mean_field_kernel(%arg0: memref<128x128xf32, #tpu.memory_space<any>>, %arg1: memref<1x128xf32, #tpu.memory_space<vmem>>, %arg2: memref<1x128xf32, #tpu.memory_space<vmem>>, %arg3: memref<2x128xf32, #tpu.memory_space<vmem>>, %arg4: memref<128x128xf32, #tpu.memory_space<vmem>>, %arg5: memref<1x!tpu.dma_semaphore, #tpu.memory_space<semaphore_mem>>) attributes {dimension_semantics = [], scalar_prefetch = 0 : i64, scratch_operands = 2 : i64, tpu.core_type = #tpu.core_type<tc>} {
    %c0_i32 = arith.constant 0 : i32
    %c0_i32_0 = arith.constant 0 : i32
    %c0_i32_1 = arith.constant 0 : i32
    %0 = tpu.memref_slice %arg0[%c0_i32_0, %c0_i32_1] : memref<128x128xf32, #tpu.memory_space<any>> -> memref<128x128xf32, #tpu.memory_space<any>>
    %c0_i32_2 = arith.constant 0 : i32
    %c0_i32_3 = arith.constant 0 : i32
    %1 = tpu.memref_slice %arg4[%c0_i32_2, %c0_i32_3] : memref<128x128xf32, #tpu.memory_space<vmem>> -> memref<128x128xf32, #tpu.memory_space<vmem>>
    %2 = tpu.memref_slice %arg5[%c0_i32] : memref<1x!tpu.dma_semaphore, #tpu.memory_space<semaphore_mem>> -> memref<1x!tpu.dma_semaphore, #tpu.memory_space<semaphore_mem>>
    %3 = tpu.memref_squeeze %2 : memref<1x!tpu.dma_semaphore, #tpu.memory_space<semaphore_mem>> -> memref<!tpu.dma_semaphore, #tpu.memory_space<semaphore_mem>>
    tpu.enqueue_dma source(%0 : memref<128x128xf32, #tpu.memory_space<any>>) target(%1 : memref<128x128xf32, #tpu.memory_space<vmem>>) target_semaphore(%3 : memref<!tpu.dma_semaphore, #tpu.memory_space<semaphore_mem>>)
    %c0 = arith.constant 0 : index
    %c0_4 = arith.constant 0 : index
    %4 = vector.load %arg1[%c0, %c0_4] : memref<1x128xf32, #tpu.memory_space<vmem>>, vector<1x128xf32>
    %cst = arith.constant 2.000000e+00 : f32
    %5 = vector.broadcast %cst : f32 to vector<1x128xf32>
    %6 = arith.mulf %5, %4 : vector<1x128xf32>
    %cst_5 = arith.constant 1.000000e+00 : f32
    %7 = vector.broadcast %cst_5 : f32 to vector<1x128xf32>
    %8 = arith.subf %6, %7 : vector<1x128xf32>
    %c0_6 = arith.constant 0 : index
    %c0_7 = arith.constant 0 : index
    %9 = vector.load %arg2[%c0_6, %c0_7] : memref<1x128xf32, #tpu.memory_space<vmem>>, vector<1x128xf32>
    %cst_8 = arith.constant -0.693147182 : f32
    %10 = vector.broadcast %cst_8 : f32 to vector<1x128xf32>
    %11 = math.exp %10 : vector<1x128xf32>
    %cst_9 = arith.constant 0.000000e+00 : f32
    %12 = vector.broadcast %cst_9 : f32 to vector<1x128xf32>
    %13 = arith.subf %12, %11 : vector<1x128xf32>
    %cst_10 = arith.constant 0.000000e+00 : f32
    %14 = vector.broadcast %cst_10 : f32 to vector<1x128xf32>
    %c0_i32_11 = arith.constant 0 : i32
    %c0_i32_12 = arith.constant 0 : i32
    %c0_i32_13 = arith.constant 0 : i32
    %15 = tpu.memref_slice %arg0[%c0_i32_12, %c0_i32_13] : memref<128x128xf32, #tpu.memory_space<any>> -> memref<128x128xf32, #tpu.memory_space<any>>
    %c0_i32_14 = arith.constant 0 : i32
    %c0_i32_15 = arith.constant 0 : i32
    %16 = tpu.memref_slice %arg4[%c0_i32_14, %c0_i32_15] : memref<128x128xf32, #tpu.memory_space<vmem>> -> memref<128x128xf32, #tpu.memory_space<vmem>>
    %17 = tpu.memref_slice %arg5[%c0_i32_11] : memref<1x!tpu.dma_semaphore, #tpu.memory_space<semaphore_mem>> -> memref<1x!tpu.dma_semaphore, #tpu.memory_space<semaphore_mem>>
    %18 = tpu.memref_squeeze %17 : memref<1x!tpu.dma_semaphore, #tpu.memory_space<semaphore_mem>> -> memref<!tpu.dma_semaphore, #tpu.memory_space<semaphore_mem>>
    tpu.wait_dma2 semaphore(%18 : memref<!tpu.dma_semaphore, #tpu.memory_space<semaphore_mem>>) src(%15 : memref<128x128xf32, #tpu.memory_space<any>>) dst(%16 : memref<128x128xf32, #tpu.memory_space<vmem>>)
    %c0_16 = arith.constant 0 : index
    %c0_17 = arith.constant 0 : index
    %19 = vector.load %arg4[%c0_16, %c0_17] : memref<128x128xf32, #tpu.memory_space<vmem>>, vector<128x128xf32>
    %cst_18 = arith.constant dense<0.000000e+00> : vector<1x128xf32>
    %20 = tpu.matmul %13, %19, %cst_18 {dimension_numbers = #tpu.dot_dimension_numbers<[1], [0], [0], [1], [0, 0, 1, 1], [], []>} : vector<1x128xf32>, vector<128x128xf32>, vector<1x128xf32> -> vector<1x128xf32>
    %21 = arith.addf %14, %20 : vector<1x128xf32>
    %cst_19 = arith.constant 1.1920929E-7 : f32
    %22 = vector.broadcast %cst_19 : f32 to vector<1x128xf32>
    %23 = arith.addf %11, %22 : vector<1x128xf32>
    %24 = math.log %23 : vector<1x128xf32>
    %cst_20 = arith.constant 8.000000e+00 : f32
    %25 = vector.broadcast %cst_20 : f32 to vector<1x128xf32>
    %26 = arith.mulf %25, %21 : vector<1x128xf32>
    %27 = arith.addf %24, %26 : vector<1x128xf32>
    %cst_21 = arith.constant 4.000000e+00 : f32
    %28 = vector.broadcast %cst_21 : f32 to vector<1x128xf32>
    %29 = arith.mulf %28, %9 : vector<1x128xf32>
    %30 = arith.mulf %29, %11 : vector<1x128xf32>
    %31 = arith.addf %27, %30 : vector<1x128xf32>
    %32 = arith.addf %31, %8 : vector<1x128xf32>
    %33 = arith.maximumf %32, %10 : vector<1x128xf32>
    %34 = arith.subf %32, %10 : vector<1x128xf32>
    %35 = math.absf %34 : vector<1x128xf32>
    %cst_22 = arith.constant 0.000000e+00 : f32
    %36 = vector.broadcast %cst_22 : f32 to vector<1x128xf32>
    %37 = arith.subf %36, %35 : vector<1x128xf32>
    %38 = math.exp %37 : vector<1x128xf32>
    %39 = math.log1p %38 : vector<1x128xf32>
    %40 = arith.addf %33, %39 : vector<1x128xf32>
    %41 = arith.subf %10, %40 : vector<1x128xf32>
    %42 = math.exp %41 : vector<1x128xf32>
    %cst_23 = arith.constant 0.000000e+00 : f32
    %43 = vector.broadcast %cst_23 : f32 to vector<1x128xf32>
    %44 = arith.subf %43, %42 : vector<1x128xf32>
    %c0_24 = arith.constant 0 : index
    %c0_25 = arith.constant 0 : index
    %45 = vector.load %arg4[%c0_24, %c0_25] : memref<128x128xf32, #tpu.memory_space<vmem>>, vector<128x128xf32>
    %cst_26 = arith.constant dense<0.000000e+00> : vector<1x128xf32>
    %46 = tpu.matmul %44, %45, %cst_26 {dimension_numbers = #tpu.dot_dimension_numbers<[1], [0], [0], [1], [0, 0, 1, 1], [], []>} : vector<1x128xf32>, vector<128x128xf32>, vector<1x128xf32> -> vector<1x128xf32>
    %cst_27 = arith.constant 1.1920929E-7 : f32
    %47 = vector.broadcast %cst_27 : f32 to vector<1x128xf32>
    %48 = arith.addf %42, %47 : vector<1x128xf32>
    %49 = math.log %48 : vector<1x128xf32>
    %cst_28 = arith.constant 8.000000e+00 : f32
    %50 = vector.broadcast %cst_28 : f32 to vector<1x128xf32>
    %51 = arith.mulf %50, %46 : vector<1x128xf32>
    %52 = arith.addf %49, %51 : vector<1x128xf32>
    %cst_29 = arith.constant 4.000000e+00 : f32
    %53 = vector.broadcast %cst_29 : f32 to vector<1x128xf32>
    %54 = arith.mulf %53, %9 : vector<1x128xf32>
    %55 = arith.mulf %54, %42 : vector<1x128xf32>
    %56 = arith.addf %52, %55 : vector<1x128xf32>
    %57 = arith.addf %56, %8 : vector<1x128xf32>
    %58 = arith.maximumf %57, %41 : vector<1x128xf32>
    %59 = arith.subf %57, %41 : vector<1x128xf32>
    %60 = math.absf %59 : vector<1x128xf32>
    %cst_30 = arith.constant 0.000000e+00 : f32
    %61 = vector.broadcast %cst_30 : f32 to vector<1x128xf32>
    %62 = arith.subf %61, %60 : vector<1x128xf32>
    %63 = math.exp %62 : vector<1x128xf32>
    %64 = math.log1p %63 : vector<1x128xf32>
    %65 = arith.addf %58, %64 : vector<1x128xf32>
    %66 = arith.subf %41, %65 : vector<1x128xf32>
    %67 = math.exp %66 : vector<1x128xf32>
    %cst_31 = arith.constant 0.000000e+00 : f32
    %68 = vector.broadcast %cst_31 : f32 to vector<1x128xf32>
    %69 = arith.subf %68, %67 : vector<1x128xf32>
    %c0_32 = arith.constant 0 : index
    %c0_33 = arith.constant 0 : index
    %70 = vector.load %arg4[%c0_32, %c0_33] : memref<128x128xf32, #tpu.memory_space<vmem>>, vector<128x128xf32>
    %cst_34 = arith.constant dense<0.000000e+00> : vector<1x128xf32>
    %71 = tpu.matmul %69, %70, %cst_34 {dimension_numbers = #tpu.dot_dimension_numbers<[1], [0], [0], [1], [0, 0, 1, 1], [], []>} : vector<1x128xf32>, vector<128x128xf32>, vector<1x128xf32> -> vector<1x128xf32>
    %cst_35 = arith.constant 1.1920929E-7 : f32
    %72 = vector.broadcast %cst_35 : f32 to vector<1x128xf32>
    %73 = arith.addf %67, %72 : vector<1x128xf32>
    %74 = math.log %73 : vector<1x128xf32>
    %cst_36 = arith.constant 8.000000e+00 : f32
    %75 = vector.broadcast %cst_36 : f32 to vector<1x128xf32>
    %76 = arith.mulf %75, %71 : vector<1x128xf32>
    %77 = arith.addf %74, %76 : vector<1x128xf32>
    %cst_37 = arith.constant 4.000000e+00 : f32
    %78 = vector.broadcast %cst_37 : f32 to vector<1x128xf32>
    %79 = arith.mulf %78, %9 : vector<1x128xf32>
    %80 = arith.mulf %79, %67 : vector<1x128xf32>
    %81 = arith.addf %77, %80 : vector<1x128xf32>
    %82 = arith.addf %81, %8 : vector<1x128xf32>
    %83 = arith.maximumf %82, %66 : vector<1x128xf32>
    %84 = arith.subf %82, %66 : vector<1x128xf32>
    %85 = math.absf %84 : vector<1x128xf32>
    %cst_38 = arith.constant 0.000000e+00 : f32
    %86 = vector.broadcast %cst_38 : f32 to vector<1x128xf32>
    %87 = arith.subf %86, %85 : vector<1x128xf32>
    %88 = math.exp %87 : vector<1x128xf32>
    %89 = math.log1p %88 : vector<1x128xf32>
    %90 = arith.addf %83, %89 : vector<1x128xf32>
    %91 = arith.subf %66, %90 : vector<1x128xf32>
    %92 = math.exp %91 : vector<1x128xf32>
    %cst_39 = arith.constant 0.000000e+00 : f32
    %93 = vector.broadcast %cst_39 : f32 to vector<1x128xf32>
    %94 = arith.subf %93, %92 : vector<1x128xf32>
    %c0_40 = arith.constant 0 : index
    %c0_41 = arith.constant 0 : index
    %95 = vector.load %arg4[%c0_40, %c0_41] : memref<128x128xf32, #tpu.memory_space<vmem>>, vector<128x128xf32>
    %cst_42 = arith.constant dense<0.000000e+00> : vector<1x128xf32>
    %96 = tpu.matmul %94, %95, %cst_42 {dimension_numbers = #tpu.dot_dimension_numbers<[1], [0], [0], [1], [0, 0, 1, 1], [], []>} : vector<1x128xf32>, vector<128x128xf32>, vector<1x128xf32> -> vector<1x128xf32>
    %cst_43 = arith.constant 1.1920929E-7 : f32
    %97 = vector.broadcast %cst_43 : f32 to vector<1x128xf32>
    %98 = arith.addf %92, %97 : vector<1x128xf32>
    %99 = math.log %98 : vector<1x128xf32>
    %cst_44 = arith.constant 8.000000e+00 : f32
    %100 = vector.broadcast %cst_44 : f32 to vector<1x128xf32>
    %101 = arith.mulf %100, %96 : vector<1x128xf32>
    %102 = arith.addf %99, %101 : vector<1x128xf32>
    %cst_45 = arith.constant 4.000000e+00 : f32
    %103 = vector.broadcast %cst_45 : f32 to vector<1x128xf32>
    %104 = arith.mulf %103, %9 : vector<1x128xf32>
    %105 = arith.mulf %104, %92 : vector<1x128xf32>
    %106 = arith.addf %102, %105 : vector<1x128xf32>
    %107 = arith.addf %106, %8 : vector<1x128xf32>
    %108 = arith.maximumf %107, %91 : vector<1x128xf32>
    %109 = arith.subf %107, %91 : vector<1x128xf32>
    %110 = math.absf %109 : vector<1x128xf32>
    %cst_46 = arith.constant 0.000000e+00 : f32
    %111 = vector.broadcast %cst_46 : f32 to vector<1x128xf32>
    %112 = arith.subf %111, %110 : vector<1x128xf32>
    %113 = math.exp %112 : vector<1x128xf32>
    %114 = math.log1p %113 : vector<1x128xf32>
    %115 = arith.addf %108, %114 : vector<1x128xf32>
    %116 = arith.subf %91, %115 : vector<1x128xf32>
    %117 = math.exp %116 : vector<1x128xf32>
    %cst_47 = arith.constant 0.000000e+00 : f32
    %118 = vector.broadcast %cst_47 : f32 to vector<1x128xf32>
    %119 = arith.subf %118, %117 : vector<1x128xf32>
    %c0_48 = arith.constant 0 : index
    %c0_49 = arith.constant 0 : index
    %120 = vector.load %arg4[%c0_48, %c0_49] : memref<128x128xf32, #tpu.memory_space<vmem>>, vector<128x128xf32>
    %cst_50 = arith.constant dense<0.000000e+00> : vector<1x128xf32>
    %121 = tpu.matmul %119, %120, %cst_50 {dimension_numbers = #tpu.dot_dimension_numbers<[1], [0], [0], [1], [0, 0, 1, 1], [], []>} : vector<1x128xf32>, vector<128x128xf32>, vector<1x128xf32> -> vector<1x128xf32>
    %cst_51 = arith.constant 1.1920929E-7 : f32
    %122 = vector.broadcast %cst_51 : f32 to vector<1x128xf32>
    %123 = arith.addf %117, %122 : vector<1x128xf32>
    %124 = math.log %123 : vector<1x128xf32>
    %cst_52 = arith.constant 8.000000e+00 : f32
    %125 = vector.broadcast %cst_52 : f32 to vector<1x128xf32>
    %126 = arith.mulf %125, %121 : vector<1x128xf32>
    %127 = arith.addf %124, %126 : vector<1x128xf32>
    %cst_53 = arith.constant 4.000000e+00 : f32
    %128 = vector.broadcast %cst_53 : f32 to vector<1x128xf32>
    %129 = arith.mulf %128, %9 : vector<1x128xf32>
    %130 = arith.mulf %129, %117 : vector<1x128xf32>
    %131 = arith.addf %127, %130 : vector<1x128xf32>
    %132 = arith.addf %131, %8 : vector<1x128xf32>
    %133 = arith.maximumf %132, %116 : vector<1x128xf32>
    %134 = arith.subf %132, %116 : vector<1x128xf32>
    %135 = math.absf %134 : vector<1x128xf32>
    %cst_54 = arith.constant 0.000000e+00 : f32
    %136 = vector.broadcast %cst_54 : f32 to vector<1x128xf32>
    %137 = arith.subf %136, %135 : vector<1x128xf32>
    %138 = math.exp %137 : vector<1x128xf32>
    %139 = math.log1p %138 : vector<1x128xf32>
    %140 = arith.addf %133, %139 : vector<1x128xf32>
    %141 = arith.subf %132, %140 : vector<1x128xf32>
    %142 = arith.subf %116, %140 : vector<1x128xf32>
    %c0_55 = arith.constant 0 : index
    %c0_56 = arith.constant 0 : index
    %143 = vector.load %arg3[%c0_55, %c0_56] : memref<2x128xf32, #tpu.memory_space<vmem>>, vector<1x128xf32>
    tpu.vector_store %arg3[%c0_55, %c0_56], %141 {strides = array<i32>} : memref<2x128xf32, #tpu.memory_space<vmem>>, vector<1x128xf32>,
    %c1 = arith.constant 1 : index
    %c0_57 = arith.constant 0 : index
    %144 = vector.load %arg3[%c1, %c0_57] : memref<2x128xf32, #tpu.memory_space<vmem>>, vector<1x128xf32>
    tpu.vector_store %arg3[%c1, %c0_57], %142 {strides = array<i32>} : memref<2x128xf32, #tpu.memory_space<vmem>>, vector<1x128xf32>,
    return
  }
}

</mosaic_0001>

<llo_original>
// kernel: tpu_custom_call.1
$region0: #{tpu_custom_call.1}
  #allocation0 [shape = 'u32[]', space=smem, size = 0x4, offset = 0x4, fixed_abs, tag = 'smem constant byte address 0x4 - core index']
  #allocation1 [shape = 'u32[144,128]{1,0:T(1,128)}', space=vmem, size = 0x12000, scoped, tag = 'internal scratch']
  #allocation2 [shape = 'f32[128,128]{1,0:T(8,128)}', space=vmem, size = 0x10000, scoped, tag = 'scratch operand']
  #allocation3 [shape = 's32[1]{0}', space=sflag, size = 0x4, scoped, tag = 'scratch operand']
  #allocation6 [shape = 's32[]', space=sflag, size = 0x4, offset = 0, fixed_abs, tag = 'sflag constant byte address 0x0 - dummy sync flag']
  #allocation7 [shape = 's32[]', space=sflag, size = 0x4, offset = 0, fixed_abs, tag = 'sflag constant byte address 0x0 - dummy sync flag']
  #allocation8 [shape = 'u32[]', space=smem, size = 0x4, offset = 0x44, fixed_abs, tag = 'smem constant byte address 0x44 - assertion arg 0']
  #allocation9 [shape = 'u32[]', space=smem, size = 0x4, offset = 0x48, fixed_abs, tag = 'smem constant byte address 0x48 - assertion arg 1']
  %s0 = inlined_call_operand.hbm [shape: f32[128,128], index: 0, kind: input, shape index: {}]
  %s1 = inlined_call_operand.vmem [shape: f32[1,128], index: 1, kind: input, shape index: {}]
  %s2 = inlined_call_operand.vmem [shape: f32[1,128], index: 2, kind: input, shape index: {}]
  %s3 = inlined_call_operand.hbm [shape: f32[2,128], index: 3, kind: output, shape index: {}]
  %s4 = sld [smem:[#allocation0]]
  $region22: #{tpu_custom_call.1} parent=0
    _
  %s6 = ssub.s32 1, %s4
  %s7 = scalar_select 0, %s6, %s4
  $region1: #{tpu_custom_call.1} parent=0
    #allocation4 [shape = 'u8[1024]{0}', space=vmem, size = 0x400, scoped, tag = 'output window, operand 0, single buffered']
    #allocation5 [shape = 's32[1]{0}', space=sflag, size = 0x4, scoped, tag = 'scoped memory for tpu_custom_call.1']
    %8 = vsyncpa [#allocation5], 0
    // Predicated region
    $region2: #{tpu_custom_call.1} parent=1 // pred_check
      _
    $region3: #{tpu_custom_call.1} parent=1 // pred_check_branch
      %10 = sbr.rel (0) target = $region5
    $region4: #{tpu_custom_call.1} parent=1 // pred_region
      _
    $region5: #{tpu_custom_call.1} parent=1 // pred_fallthru
      _
    // Predicated region
    $region6: #{tpu_custom_call.1} parent=1 // pred_check
      _
    $region7: #{tpu_custom_call.1} parent=1 // pred_check_branch
      %12 = sbr.rel (0) target = $region9
    $region8: #{tpu_custom_call.1} parent=1 // pred_region
      _
    $region9: #{tpu_custom_call.1} parent=1 // pred_fallthru
      _
    // Predicated region
    $region10: #{tpu_custom_call.1} parent=1 // pred_check
      _
    $region11: #{tpu_custom_call.1} parent=1 // pred_check_branch
      %14 = sbr.rel target = $region13
    $region12: #{tpu_custom_call.1} parent=1 // pred_region
      %15 = sst [smem:[#allocation8]] [#allocation7]
      %16 = sst [smem:[#allocation9]] [#allocation6]
    $region13: #{tpu_custom_call.1} parent=1 // pred_fallthru
      _
    %18 = shalt.err (0)
    %s20 = sshll.u32 [#allocation2], 4
    %s21 = int_to_ptr.vmem [resolvable:$true] %s20
    %23 = dma.hbm_to_vmem [thread:$0]  %s0, 2048, %s21, [#allocation3]
    %v24 = vld [vmem:[%s1] sm:$0x1]
    %v25 = vmul.f32 %v24, 2.0
    %v26 = vsub.f32 %v25, 1.0
    %v27 = vld [vmem:[%s2] sm:$0x1]
    %s28 = smul.u32 128, 1
    %s29 = sshll.u32 %s28, 4
    %30 = dma.done [#allocation3], %s29
    %v31 = vld [vmem:[#allocation2] sm:$0xff]
    %v32 = vld [vmem:[#allocation2 + $0x8] sm:$0xff]
    %v33 = vld [vmem:[#allocation2 + $0x10] sm:$0xff]
    %v34 = vld [vmem:[#allocation2 + $0x18] sm:$0xff]
    %v35 = vld [vmem:[#allocation2 + $0x20] sm:$0xff]
    %v36 = vld [vmem:[#allocation2 + $0x28] sm:$0xff]
    %v37 = vld [vmem:[#allocation2 + $0x30] sm:$0xff]
    %v38 = vld [vmem:[#allocation2 + $0x38] sm:$0xff]
    %v39 = vld [vmem:[#allocation2 + $0x40] sm:$0xff]
    %v40 = vld [vmem:[#allocation2 + $0x48] sm:$0xff]
    %v41 = vld [vmem:[#allocation2 + $0x50] sm:$0xff]
    %v42 = vld [vmem:[#allocation2 + $0x58] sm:$0xff]
    %v43 = vld [vmem:[#allocation2 + $0x60] sm:$0xff]
    %v44 = vld [vmem:[#allocation2 + $0x68] sm:$0xff]
    %v45 = vld [vmem:[#allocation2 + $0x70] sm:$0xff]
    %v46 = vld [vmem:[#allocation2 + $0x78] sm:$0xff]
    %47 = vmatprep.subr.mxu0 0.0
    %48 = vmatpush1.msra.mxu0 %v31
    %49 = vmatprep.subr.mxu0 0.0
    %50 = vmatpush1.msra.mxu0 %v32
    %51 = vmatprep.subr.mxu0 0.0
    %52 = vmatpush1.msra.mxu0 %v33
    %53 = vmatprep.subr.mxu0 0.0
    %54 = vmatpush1.msra.mxu0 %v34
    %55 = vmatprep.subr.mxu0 0.0
    %56 = vmatpush1.msra.mxu0 %v35
    %57 = vmatprep.subr.mxu0 0.0
    %58 = vmatpush1.msra.mxu0 %v36
    %59 = vmatprep.subr.mxu0 0.0
    %60 = vmatpush1.msra.mxu0 %v37
    %61 = vmatprep.subr.mxu0 0.0
    %62 = vmatpush1.msra.mxu0 %v38
    %63 = vmatprep.subr.mxu0 0.0
    %64 = vmatpush1.msra.mxu0 %v39
    %65 = vmatprep.subr.mxu0 0.0
    %66 = vmatpush1.msra.mxu0 %v40
    %67 = vmatprep.subr.mxu0 0.0
    %68 = vmatpush1.msra.mxu0 %v41
    %69 = vmatprep.subr.mxu0 0.0
    %70 = vmatpush1.msra.mxu0 %v42
    %71 = vmatprep.subr.mxu0 0.0
    %72 = vmatpush1.msra.mxu0 %v43
    %73 = vmatprep.subr.mxu0 0.0
    %74 = vmatpush1.msra.mxu0 %v44
    %75 = vmatprep.subr.mxu0 0.0
    %76 = vmatpush1.msra.mxu0 %v45
    %77 = vmatprep.subr.mxu0 0.0
    %78 = vmatpush1.msra.mxu0 %v46
    %79 = vmatprep.subr.mxu0 0.0
    %80 = vmatpush1.msra.mxu0 0.0
    %81 = vmatprep.subr.mxu0 0.0
    %82 = vmatpush1.msra.mxu0 0.0
    %83 = vmatprep.subr.mxu0 0.0
    %84 = vmatpush1.msra.mxu0 0.0
    %85 = vmatprep.subr.mxu0 0.0
    %86 = vmatpush1.msra.mxu0 0.0
    %87 = vmatprep.subr.mxu0 0.0
    %88 = vmatpush1.msra.mxu0 0.0
    %89 = vmatprep.subr.mxu0 0.0
    %90 = vmatpush1.msra.mxu0 0.0
    %91 = vmatprep.subr.mxu0 0.0
    %92 = vmatpush1.msra.mxu0 0.0
    %93 = vmatprep.subr.mxu0 0.0
    %94 = vmatpush1.msra.mxu0 0.0
    %95 = vmatprep.subr.mxu0 0.0
    %96 = vmatpush1.msra.mxu0 0.0
    %97 = vmatprep.subr.mxu0 0.0
    %98 = vmatpush1.msra.mxu0 0.0
    %99 = vmatprep.subr.mxu0 0.0
    %100 = vmatpush1.msra.mxu0 0.0
    %101 = vmatprep.subr.mxu0 0.0
    %102 = vmatpush1.msra.mxu0 0.0
    %103 = vmatprep.subr.mxu0 0.0
    %104 = vmatpush1.msra.mxu0 0.0
    %105 = vmatprep.subr.mxu0 0.0
    %106 = vmatpush1.msra.mxu0 0.0
    %107 = vmatprep.subr.mxu0 0.0
    %108 = vmatpush1.msra.mxu0 0.0
    %109 = vmatprep.subr.mxu0 0.0
    %110 = vmatpush1.msra.mxu0 0.0
    %111 = vmatprep.mubr.f32.mxu0 0.0
    %112 = vmatmul.mubr.f32.gmra.mrb[0].mxu0 -0.5
    %v113 = vpop.f32.mrb[0].mxu0
    %v114 = vadd.f32 0.0, %v113
    %v115 = vpop.f32.mrb[0].mxu0
    %116 = vdwg.mxu0
    %v117 = vmul.f32 %v114, 8.0
    %v118 = vadd.f32 %v117, -0.69314694
    %v119 = vmul.f32 %v27, 4.0
    %v120 = vmul.f32 %v119, 0.5
    %v121 = vadd.f32 %v118, %v120
    %v122 = vadd.f32 %v121, %v26
    %v123 = vmax.f32 %v122, -0.6931472
    %v124 = vsub.f32 %v122, -0.6931472
    %v125 = vand.u32 2147483647, %v124
    %v126 = vsub.f32 0.0, %v125
    %v127 = vmul.f32 %v126, 1.442695
    %v128 = vpow.pop %v127
    %v129 = vadd.f32 %v128, 1.0
    %v130 = vlog2.pop %v129
    %v131 = vmul.f32 %v130, 0.6931472
    %v132 = vmul.f32 -0.5, %v128
    %v133 = vadd.f32 %v132, 1.0
    %v134 = vmul.f32 %v133, %v128
    %v135 = vand.u32 2147483647, %v128
    %vm136 = vcmp.lt.f32.partialorder %v135, 0.0004427343
    %v137 = vsel %vm136, %v134, %v131
    %v138 = vadd.f32 %v123, %v137
    %v139 = vsub.f32 -0.6931472, %v138
    %v140 = vmul.f32 %v139, 1.442695
    %v141 = vpow.pop %v140
    %v142 = vsub.f32 0.0, %v141
    %143 = vmatprep.subr.mxu0 0.0
    %144 = vmatpush1.msra.mxu0 %v31
    %145 = vmatprep.subr.mxu0 0.0
    %146 = vmatpush1.msra.mxu0 %v32
    %147 = vmatprep.subr.mxu0 0.0
    %148 = vmatpush1.msra.mxu0 %v33
    %149 = vmatprep.subr.mxu0 0.0
    %150 = vmatpush1.msra.mxu0 %v34
    %151 = vmatprep.subr.mxu0 0.0
    %152 = vmatpush1.msra.mxu0 %v35
    %153 = vmatprep.subr.mxu0 0.0
    %154 = vmatpush1.msra.mxu0 %v36
    %155 = vmatprep.subr.mxu0 0.0
    %156 = vmatpush1.msra.mxu0 %v37
    %157 = vmatprep.subr.mxu0 0.0
    %158 = vmatpush1.msra.mxu0 %v38
    %159 = vmatprep.subr.mxu0 0.0
    %160 = vmatpush1.msra.mxu0 %v39
    %161 = vmatprep.subr.mxu0 0.0
    %162 = vmatpush1.msra.mxu0 %v40
    %163 = vmatprep.subr.mxu0 0.0
    %164 = vmatpush1.msra.mxu0 %v41
    %165 = vmatprep.subr.mxu0 0.0
    %166 = vmatpush1.msra.mxu0 %v42
    %167 = vmatprep.subr.mxu0 0.0
    %168 = vmatpush1.msra.mxu0 %v43
    %169 = vmatprep.subr.mxu0 0.0
    %170 = vmatpush1.msra.mxu0 %v44
    %171 = vmatprep.subr.mxu0 0.0
    %172 = vmatpush1.msra.mxu0 %v45
    %173 = vmatprep.subr.mxu0 0.0
    %174 = vmatpush1.msra.mxu0 %v46
    %175 = vmatprep.subr.mxu0 0.0
    %176 = vmatpush1.msra.mxu0 0.0
    %177 = vmatprep.subr.mxu0 0.0
    %178 = vmatpush1.msra.mxu0 0.0
    %179 = vmatprep.subr.mxu0 0.0
    %180 = vmatpush1.msra.mxu0 0.0
    %181 = vmatprep.subr.mxu0 0.0
    %182 = vmatpush1.msra.mxu0 0.0
    %183 = vmatprep.subr.mxu0 0.0
    %184 = vmatpush1.msra.mxu0 0.0
    %185 = vmatprep.subr.mxu0 0.0
    %186 = vmatpush1.msra.mxu0 0.0
    %187 = vmatprep.subr.mxu0 0.0
    %188 = vmatpush1.msra.mxu0 0.0
    %189 = vmatprep.subr.mxu0 0.0
    %190 = vmatpush1.msra.mxu0 0.0
    %191 = vmatprep.subr.mxu0 0.0
    %192 = vmatpush1.msra.mxu0 0.0
    %193 = vmatprep.subr.mxu0 0.0
    %194 = vmatpush1.msra.mxu0 0.0
    %195 = vmatprep.subr.mxu0 0.0
    %196 = vmatpush1.msra.mxu0 0.0
    %197 = vmatprep.subr.mxu0 0.0
    %198 = vmatpush1.msra.mxu0 0.0
    %199 = vmatprep.subr.mxu0 0.0
    %200 = vmatpush1.msra.mxu0 0.0
    %201 = vmatprep.subr.mxu0 0.0
    %202 = vmatpush1.msra.mxu0 0.0
    %203 = vmatprep.subr.mxu0 0.0
    %204 = vmatpush1.msra.mxu0 0.0
    %205 = vmatprep.subr.mxu0 0.0
    %206 = vmatpush1.msra.mxu0 0.0
    %207 = vmatprep.mubr.f32.mxu0 0.0
    %208 = vmatmul.mubr.f32.gmra.mrb[0].mxu0 %v142
    %v209 = vpop.f32.mrb[0].mxu0
    %v210 = vadd.f32 0.0, %v209
    %v211 = vpop.f32.mrb[0].mxu0
    %212 = vdwg.mxu0
    %v213 = vadd.f32 %v141, 1.1920929e-07
    %v214 = vlog2.pop %v213
    %v215 = vmul.f32 %v214, 0.6931472
    %v216 = vmul.f32 %v210, 8.0
    %v217 = vadd.f32 %v215, %v216
    %v218 = vmul.f32 %v119, %v141
    %v219 = vadd.f32 %v217, %v218
    %v220 = vadd.f32 %v219, %v26
    %v221 = vmax.f32 %v220, %v139
    %v222 = vsub.f32 %v220, %v139
    %v223 = vand.u32 2147483647, %v222
    %v224 = vsub.f32 0.0, %v223
    %v225 = vmul.f32 %v224, 1.442695
    %v226 = vpow.pop %v225
    %v227 = vadd.f32 %v226, 1.0
    %v228 = vlog2.pop %v227
    %v229 = vmul.f32 %v228, 0.6931472
    %v230 = vmul.f32 -0.5, %v226
    %v231 = vadd.f32 %v230, 1.0
    %v232 = vmul.f32 %v231, %v226
    %v233 = vand.u32 2147483647, %v226
    %vm234 = vcmp.lt.f32.partialorder %v233, 0.0004427343
    %v235 = vsel %vm234, %v232, %v229
    %v236 = vadd.f32 %v221, %v235
    %v237 = vsub.f32 %v139, %v236
    %v238 = vmul.f32 %v237, 1.442695
    %v239 = vpow.pop %v238
    %v240 = vsub.f32 0.0, %v239
    %241 = vmatprep.subr.mxu0 0.0
    %242 = vmatpush1.msra.mxu0 %v31
    %243 = vmatprep.subr.mxu0 0.0
    %244 = vmatpush1.msra.mxu0 %v32
    %245 = vmatprep.subr.mxu0 0.0
    %246 = vmatpush1.msra.mxu0 %v33
    %247 = vmatprep.subr.mxu0 0.0
    %248 = vmatpush1.msra.mxu0 %v34
    %249 = vmatprep.subr.mxu0 0.0
    %250 = vmatpush1.msra.mxu0 %v35
    %251 = vmatprep.subr.mxu0 0.0
    %252 = vmatpush1.msra.mxu0 %v36
    %253 = vmatprep.subr.mxu0 0.0
    %254 = vmatpush1.msra.mxu0 %v37
    %255 = vmatprep.subr.mxu0 0.0
    %256 = vmatpush1.msra.mxu0 %v38
    %257 = vmatprep.subr.mxu0 0.0
    %258 = vmatpush1.msra.mxu0 %v39
    %259 = vmatprep.subr.mxu0 0.0
    %260 = vmatpush1.msra.mxu0 %v40
    %261 = vmatprep.subr.mxu0 0.0
    %262 = vmatpush1.msra.mxu0 %v41
    %263 = vmatprep.subr.mxu0 0.0
    %264 = vmatpush1.msra.mxu0 %v42
    %265 = vmatprep.subr.mxu0 0.0
    %266 = vmatpush1.msra.mxu0 %v43
    %267 = vmatprep.subr.mxu0 0.0
    %268 = vmatpush1.msra.mxu0 %v44
    %269 = vmatprep.subr.mxu0 0.0
    %270 = vmatpush1.msra.mxu0 %v45
    %271 = vmatprep.subr.mxu0 0.0
    %272 = vmatpush1.msra.mxu0 %v46
    %273 = vmatprep.subr.mxu0 0.0
    %274 = vmatpush1.msra.mxu0 0.0
    %275 = vmatprep.subr.mxu0 0.0
    %276 = vmatpush1.msra.mxu0 0.0
    %277 = vmatprep.subr.mxu0 0.0
    %278 = vmatpush1.msra.mxu0 0.0
    %279 = vmatprep.subr.mxu0 0.0
    %280 = vmatpush1.msra.mxu0 0.0
    %281 = vmatprep.subr.mxu0 0.0
    %282 = vmatpush1.msra.mxu0 0.0
    %283 = vmatprep.subr.mxu0 0.0
    %284 = vmatpush1.msra.mxu0 0.0
    %285 = vmatprep.subr.mxu0 0.0
    %286 = vmatpush1.msra.mxu0 0.0
    %287 = vmatprep.subr.mxu0 0.0
    %288 = vmatpush1.msra.mxu0 0.0
    %289 = vmatprep.subr.mxu0 0.0
    %290 = vmatpush1.msra.mxu0 0.0
    %291 = vmatprep.subr.mxu0 0.0
    %292 = vmatpush1.msra.mxu0 0.0
    %293 = vmatprep.subr.mxu0 0.0
    %294 = vmatpush1.msra.mxu0 0.0
    %295 = vmatprep.subr.mxu0 0.0
    %296 = vmatpush1.msra.mxu0 0.0
    %297 = vmatprep.subr.mxu0 0.0
    %298 = vmatpush1.msra.mxu0 0.0
    %299 = vmatprep.subr.mxu0 0.0
    %300 = vmatpush1.msra.mxu0 0.0
    %301 = vmatprep.subr.mxu0 0.0
    %302 = vmatpush1.msra.mxu0 0.0
    %303 = vmatprep.subr.mxu0 0.0
    %304 = vmatpush1.msra.mxu0 0.0
    %305 = vmatprep.mubr.f32.mxu0 0.0
    %306 = vmatmul.mubr.f32.gmra.mrb[0].mxu0 %v240
    %v307 = vpop.f32.mrb[0].mxu0
    %v308 = vadd.f32 0.0, %v307
    %v309 = vpop.f32.mrb[0].mxu0
    %310 = vdwg.mxu0
    %v311 = vadd.f32 %v239, 1.1920929e-07
    %v312 = vlog2.pop %v311
    %v313 = vmul.f32 %v312, 0.6931472
    %v314 = vmul.f32 %v308, 8.0
    %v315 = vadd.f32 %v313, %v314
    %v316 = vmul.f32 %v119, %v239
    %v317 = vadd.f32 %v315, %v316
    %v318 = vadd.f32 %v317, %v26
    %v319 = vmax.f32 %v318, %v237
    %v320 = vsub.f32 %v318, %v237
    %v321 = vand.u32 2147483647, %v320
    %v322 = vsub.f32 0.0, %v321
    %v323 = vmul.f32 %v322, 1.442695
    %v324 = vpow.pop %v323
    %v325 = vadd.f32 %v324, 1.0
    %v326 = vlog2.pop %v325
    %v327 = vmul.f32 %v326, 0.6931472
    %v328 = vmul.f32 -0.5, %v324
    %v329 = vadd.f32 %v328, 1.0
    %v330 = vmul.f32 %v329, %v324
    %v331 = vand.u32 2147483647, %v324
    %vm332 = vcmp.lt.f32.partialorder %v331, 0.0004427343
    %v333 = vsel %vm332, %v330, %v327
    %v334 = vadd.f32 %v319, %v333
    %v335 = vsub.f32 %v237, %v334
    %v336 = vmul.f32 %v335, 1.442695
    %v337 = vpow.pop %v336
    %v338 = vsub.f32 0.0, %v337
    %339 = vmatprep.subr.mxu0 0.0
    %340 = vmatpush1.msra.mxu0 %v31
    %341 = vmatprep.subr.mxu0 0.0
    %342 = vmatpush1.msra.mxu0 %v32
    %343 = vmatprep.subr.mxu0 0.0
    %344 = vmatpush1.msra.mxu0 %v33
    %345 = vmatprep.subr.mxu0 0.0
    %346 = vmatpush1.msra.mxu0 %v34
    %347 = vmatprep.subr.mxu0 0.0
    %348 = vmatpush1.msra.mxu0 %v35
    %349 = vmatprep.subr.mxu0 0.0
    %350 = vmatpush1.msra.mxu0 %v36
    %351 = vmatprep.subr.mxu0 0.0
    %352 = vmatpush1.msra.mxu0 %v37
    %353 = vmatprep.subr.mxu0 0.0
    %354 = vmatpush1.msra.mxu0 %v38
    %355 = vmatprep.subr.mxu0 0.0
    %356 = vmatpush1.msra.mxu0 %v39
    %357 = vmatprep.subr.mxu0 0.0
    %358 = vmatpush1.msra.mxu0 %v40
    %359 = vmatprep.subr.mxu0 0.0
    %360 = vmatpush1.msra.mxu0 %v41
    %361 = vmatprep.subr.mxu0 0.0
    %362 = vmatpush1.msra.mxu0 %v42
    %363 = vmatprep.subr.mxu0 0.0
    %364 = vmatpush1.msra.mxu0 %v43
    %365 = vmatprep.subr.mxu0 0.0
    %366 = vmatpush1.msra.mxu0 %v44
    %367 = vmatprep.subr.mxu0 0.0
    %368 = vmatpush1.msra.mxu0 %v45
    %369 = vmatprep.subr.mxu0 0.0
    %370 = vmatpush1.msra.mxu0 %v46
    %371 = vmatprep.subr.mxu0 0.0
    %372 = vmatpush1.msra.mxu0 0.0
    %373 = vmatprep.subr.mxu0 0.0
    %374 = vmatpush1.msra.mxu0 0.0
    %375 = vmatprep.subr.mxu0 0.0
    %376 = vmatpush1.msra.mxu0 0.0
    %377 = vmatprep.subr.mxu0 0.0
    %378 = vmatpush1.msra.mxu0 0.0
    %379 = vmatprep.subr.mxu0 0.0
    %380 = vmatpush1.msra.mxu0 0.0
    %381 = vmatprep.subr.mxu0 0.0
    %382 = vmatpush1.msra.mxu0 0.0
    %383 = vmatprep.subr.mxu0 0.0
    %384 = vmatpush1.msra.mxu0 0.0
    %385 = vmatprep.subr.mxu0 0.0
    %386 = vmatpush1.msra.mxu0 0.0
    %387 = vmatprep.subr.mxu0 0.0
    %388 = vmatpush1.msra.mxu0 0.0
    %389 = vmatprep.subr.mxu0 0.0
    %390 = vmatpush1.msra.mxu0 0.0
    %391 = vmatprep.subr.mxu0 0.0
    %392 = vmatpush1.msra.mxu0 0.0
    %393 = vmatprep.subr.mxu0 0.0
    %394 = vmatpush1.msra.mxu0 0.0
    %395 = vmatprep.subr.mxu0 0.0
    %396 = vmatpush1.msra.mxu0 0.0
    %397 = vmatprep.subr.mxu0 0.0
    %398 = vmatpush1.msra.mxu0 0.0
    %399 = vmatprep.subr.mxu0 0.0
    %400 = vmatpush1.msra.mxu0 0.0
    %401 = vmatprep.subr.mxu0 0.0
    %402 = vmatpush1.msra.mxu0 0.0
    %403 = vmatprep.mubr.f32.mxu0 0.0
    %404 = vmatmul.mubr.f32.gmra.mrb[0].mxu0 %v338
    %v405 = vpop.f32.mrb[0].mxu0
    %v406 = vadd.f32 0.0, %v405
    %v407 = vpop.f32.mrb[0].mxu0
    %408 = vdwg.mxu0
    %v409 = vadd.f32 %v337, 1.1920929e-07
    %v410 = vlog2.pop %v409
    %v411 = vmul.f32 %v410, 0.6931472
    %v412 = vmul.f32 %v406, 8.0
    %v413 = vadd.f32 %v411, %v412
    %v414 = vmul.f32 %v119, %v337
    %v415 = vadd.f32 %v413, %v414
    %v416 = vadd.f32 %v415, %v26
    %v417 = vmax.f32 %v416, %v335
    %v418 = vsub.f32 %v416, %v335
    %v419 = vand.u32 2147483647, %v418
    %v420 = vsub.f32 0.0, %v419
    %v421 = vmul.f32 %v420, 1.442695
    %v422 = vpow.pop %v421
    %v423 = vadd.f32 %v422, 1.0
    %v424 = vlog2.pop %v423
    %v425 = vmul.f32 %v424, 0.6931472
    %v426 = vmul.f32 -0.5, %v422
    %v427 = vadd.f32 %v426, 1.0
    %v428 = vmul.f32 %v427, %v422
    %v429 = vand.u32 2147483647, %v422
    %vm430 = vcmp.lt.f32.partialorder %v429, 0.0004427343
    %v431 = vsel %vm430, %v428, %v425
    %v432 = vadd.f32 %v417, %v431
    %v433 = vsub.f32 %v335, %v432
    %v434 = vmul.f32 %v433, 1.442695
    %v435 = vpow.pop %v434
    %v436 = vsub.f32 0.0, %v435
    %437 = vmatprep.subr.mxu0 0.0
    %438 = vmatpush1.msra.mxu0 %v31
    %439 = vmatprep.subr.mxu0 0.0
    %440 = vmatpush1.msra.mxu0 %v32
    %441 = vmatprep.subr.mxu0 0.0
    %442 = vmatpush1.msra.mxu0 %v33
    %443 = vmatprep.subr.mxu0 0.0
    %444 = vmatpush1.msra.mxu0 %v34
    %445 = vmatprep.subr.mxu0 0.0
    %446 = vmatpush1.msra.mxu0 %v35
    %447 = vmatprep.subr.mxu0 0.0
    %448 = vmatpush1.msra.mxu0 %v36
    %449 = vmatprep.subr.mxu0 0.0
    %450 = vmatpush1.msra.mxu0 %v37
    %451 = vmatprep.subr.mxu0 0.0
    %452 = vmatpush1.msra.mxu0 %v38
    %453 = vmatprep.subr.mxu0 0.0
    %454 = vmatpush1.msra.mxu0 %v39
    %455 = vmatprep.subr.mxu0 0.0
    %456 = vmatpush1.msra.mxu0 %v40
    %457 = vmatprep.subr.mxu0 0.0
    %458 = vmatpush1.msra.mxu0 %v41
    %459 = vmatprep.subr.mxu0 0.0
    %460 = vmatpush1.msra.mxu0 %v42
    %461 = vmatprep.subr.mxu0 0.0
    %462 = vmatpush1.msra.mxu0 %v43
    %463 = vmatprep.subr.mxu0 0.0
    %464 = vmatpush1.msra.mxu0 %v44
    %465 = vmatprep.subr.mxu0 0.0
    %466 = vmatpush1.msra.mxu0 %v45
    %467 = vmatprep.subr.mxu0 0.0
    %468 = vmatpush1.msra.mxu0 %v46
    %469 = vmatprep.subr.mxu0 0.0
    %470 = vmatpush1.msra.mxu0 0.0
    %471 = vmatprep.subr.mxu0 0.0
    %472 = vmatpush1.msra.mxu0 0.0
    %473 = vmatprep.subr.mxu0 0.0
    %474 = vmatpush1.msra.mxu0 0.0
    %475 = vmatprep.subr.mxu0 0.0
    %476 = vmatpush1.msra.mxu0 0.0
    %477 = vmatprep.subr.mxu0 0.0
    %478 = vmatpush1.msra.mxu0 0.0
    %479 = vmatprep.subr.mxu0 0.0
    %480 = vmatpush1.msra.mxu0 0.0
    %481 = vmatprep.subr.mxu0 0.0
    %482 = vmatpush1.msra.mxu0 0.0
    %483 = vmatprep.subr.mxu0 0.0
    %484 = vmatpush1.msra.mxu0 0.0
    %485 = vmatprep.subr.mxu0 0.0
    %486 = vmatpush1.msra.mxu0 0.0
    %487 = vmatprep.subr.mxu0 0.0
    %488 = vmatpush1.msra.mxu0 0.0
    %489 = vmatprep.subr.mxu0 0.0
    %490 = vmatpush1.msra.mxu0 0.0
    %491 = vmatprep.subr.mxu0 0.0
    %492 = vmatpush1.msra.mxu0 0.0
    %493 = vmatprep.subr.mxu0 0.0
    %494 = vmatpush1.msra.mxu0 0.0
    %495 = vmatprep.subr.mxu0 0.0
    %496 = vmatpush1.msra.mxu0 0.0
    %497 = vmatprep.subr.mxu0 0.0
    %498 = vmatpush1.msra.mxu0 0.0
    %499 = vmatprep.subr.mxu0 0.0
    %500 = vmatpush1.msra.mxu0 0.0
    %501 = vmatprep.mubr.f32.mxu0 0.0
    %502 = vmatmul.mubr.f32.gmra.mrb[0].mxu0 %v436
    %v503 = vpop.f32.mrb[0].mxu0
    %v504 = vadd.f32 0.0, %v503
    %v505 = vpop.f32.mrb[0].mxu0
    %506 = vdwg.mxu0
    %v507 = vadd.f32 %v435, 1.1920929e-07
    %v508 = vlog2.pop %v507
    %v509 = vmul.f32 %v508, 0.6931472
    %v510 = vmul.f32 %v504, 8.0
    %v511 = vadd.f32 %v509, %v510
    %v512 = vmul.f32 %v119, %v435
    %v513 = vadd.f32 %v511, %v512
    %v514 = vadd.f32 %v513, %v26
    %v515 = vmax.f32 %v514, %v433
    %v516 = vsub.f32 %v514, %v433
    %v517 = vand.u32 2147483647, %v516
    %v518 = vsub.f32 0.0, %v517
    %v519 = vmul.f32 %v518, 1.442695
    %v520 = vpow.pop %v519
    %v521 = vadd.f32 %v520, 1.0
    %v522 = vlog2.pop %v521
    %v523 = vmul.f32 %v522, 0.6931472
    %v524 = vmul.f32 -0.5, %v520
    %v525 = vadd.f32 %v524, 1.0
    %v526 = vmul.f32 %v525, %v520
    %v527 = vand.u32 2147483647, %v520
    %vm528 = vcmp.lt.f32.partialorder %v527, 0.0004427343
    %v529 = vsel %vm528, %v526, %v523
    %v530 = vadd.f32 %v515, %v529
    %v531 = vsub.f32 %v514, %v530
    %v532 = vsub.f32 %v433, %v530
    %533 = vst [vmem:[#allocation4] sm:$0x1] %v531
    %534 = vst [vmem:[#allocation4 + $0x1] sm:$0x1] %v532
    // Predicated region
    $region14: #{tpu_custom_call.1} parent=1 // pred_check
      _
    $region15: #{tpu_custom_call.1} parent=1 // pred_check_branch
      %536 = sbr.rel (0) target = $region17
    $region16: #{tpu_custom_call.1} parent=1 // pred_region
      %s538 = ssub.s32 32, 32
      %539 = vsyncadd [#allocation5], %s538
      %s541 = sshll.u32 [#allocation4], 4
      %s542 = int_to_ptr.vmem [resolvable:$true] %s541
      %544 = dma.vmem_to_hbm [thread:$0]  %s542, 32, %s3, [#allocation5]
    $region17: #{tpu_custom_call.1} parent=1 // pred_fallthru
      _
    // Predicated region
    $region18: #{tpu_custom_call.1} parent=1 // pred_check
      _
    $region19: #{tpu_custom_call.1} parent=1 // pred_check_branch
      %546 = sbr.rel (0) target = $region21
    $region20: #{tpu_custom_call.1} parent=1 // pred_region
      %547 = dma.done [#allocation5], 32
    $region21: #{tpu_custom_call.1} parent=1 // pred_fallthru
      _
    %548 = vsyncpa [#allocation5], 1
  %549 = vsyncmov [#allocation3]
  %s550 = vpop.sfrf %549
  %p551 = scmp.eq.s32.totalorder %s550, 0
  %p552 = pneg %p551
  %554 = shalt.err (%p552)

</llo_original>
